<compile_context>
chip_gen: v7x
topology: tpu7x:2x2x1
jax: 0.10.0
libtpu: 0.0.40
codegen_flags: <defaults>
</compile_context>

<pallas_src>
import functools

import jax
import jax.numpy as jnp
import numpy as np
from jax import lax
from jax.experimental import pallas as pl
from jax.experimental.pallas import tpu as pltpu

# ----------------------- model hyper-parameters (small) ----------------------
B = 2                         # batch
C16, C8, C4 = 32, 16, 8       # backbone channels at stride 16 / 8 / 4
H16 = 8                       # spatial size at stride 16 (s8: 16, s4: 32, img: 128)
D_PM = 32                     # PixelLevelMatching embedding dim (2048->512 in ref)
CS = 32                       # REFINE conv_s16 out channels (256 in ref)
BL = 32                       # REFINE blend / conv_s8 / conv_s4 out channels (128 in ref)

BF16 = jnp.bfloat16


# =============================== Pallas kernels ===============================

def _conv_kernel(x_ref, w_ref, b_ref, o_ref, *, shifts, relu, normalize):
    """NCHW-flat stride-1 conv with in-kernel im2col.

    x_ref: (1, Cin, Lx) padded flattened plane, w_ref: (T, Cout, Cin),
    b_ref: (Cout, 1), o_ref: (1, Cout, F) with F = Ho*Wp (cropped outside).
    out[:, f] = sum_t w[t] @ x[:, f + shift_t]  (+bias, relu, channel L2 norm).
    """
    cout = o_ref.shape[1]
    f = o_ref.shape[2]
    x = x_ref[0]
    acc = jnp.zeros((cout, f), jnp.float32)
    for t, s_t in enumerate(shifts):
        xt = x[:, s_t:s_t + f]
        acc = acc + jnp.dot(w_ref[t], xt, preferred_element_type=jnp.float32)
    y = acc + b_ref[...]
    if relu:
        y = jnp.maximum(y, 0.0)
    if normalize:
        inv = lax.rsqrt(jnp.maximum(jnp.sum(y * y, axis=0, keepdims=True), 1e-12))
        y = y * inv
    o_ref[0] = y.astype(o_ref.dtype)


def conv_nchw_flat(x, spatial, w_taps, b, *, kh, kw, pads, relu=False,
                   normalize=False, out_dtype=None):
    """x: (B, Cin, H*W) -> (B, Cout, Ho*Wo), stride-1 kh x kw conv."""
    bx, cin, _ = x.shape
    h, w = spatial
    t, cout, cin_w = w_taps.shape
    assert t == kh * kw and cin_w == cin
    if isinstance(pads, int):
        pads = (pads, pads, pads, pads)
    p_t, p_b, p_l, p_r = pads
    hp, wp = h + p_t + p_b, w + p_l + p_r
    ho, wo = hp - kh + 1, wp - kw + 1
    x4 = x.reshape(bx, cin, h, w)
    if p_t or p_b or p_l or p_r:
        x4 = jnp.pad(x4, ((0, 0), (0, 0), (p_t, p_b), (p_l, p_r)))
    xf = x4.reshape(bx, cin, hp * wp)
    if kw > 1:
        xf = jnp.pad(xf, ((0, 0), (0, 0), (0, kw - 1)))
    lx = hp * wp + (kw - 1)
    f = ho * wp
    shifts = tuple(dy * wp + dx for dy in range(kh) for dx in range(kw))
    odtype = out_dtype if out_dtype is not None else x.dtype
    out = pl.pallas_call(
        functools.partial(_conv_kernel, shifts=shifts, relu=relu,
                          normalize=normalize),
        out_shape=jax.ShapeDtypeStruct((bx, cout, f), odtype),
        grid_spec=pltpu.PrefetchScalarGridSpec(
            num_scalar_prefetch=0,
            grid=(bx,),
            in_specs=[
                pl.BlockSpec((1, cin, lx), lambda i: (i, 0, 0)),
                pl.BlockSpec((t, cout, cin), lambda i: (0, 0, 0)),
                pl.BlockSpec((cout, 1), lambda i: (0, 0)),
            ],
            out_specs=pl.BlockSpec((1, cout, f), lambda i: (i, 0, 0)),
        ),
        compiler_params=pltpu.CompilerParams(dimension_semantics=("parallel",)),
    )(xf, w_taps, b.reshape(cout, 1).astype(jnp.float32))
    if wo != wp:
        out = out.reshape(bx, cout, ho, wp)[:, :, :, :wo].reshape(bx, cout, ho * wo)
    return out, (ho, wo)


def _pm_kernel(q_ref, k_ref, o_ref, *, hw):
    """Fused pixel-matching correlation for one batch element.

    q_ref: (1, D, HW) normalized embeddings; k_ref: (1, 4*HW + 2, D) keys
    [init_bg | init_fg | prev_bg | prev_fg | int_bg | int_fg];
    o_ref: (1, 2, 3, HW) -> [bg/fg][init, prev, int].
    """
    q = q_ref[0]
    k = k_ref[0]
    s = jnp.dot(k, q, preferred_element_type=jnp.float32)        # (NK, HW)
    init_bg = jnp.max(s[0 * hw:1 * hw], axis=0, keepdims=True)
    init_fg = jnp.max(s[1 * hw:2 * hw], axis=0, keepdims=True)
    prev_bg = jnp.max(s[2 * hw:3 * hw], axis=0, keepdims=True)
    prev_fg = jnp.max(s[3 * hw:4 * hw], axis=0, keepdims=True)
    int_bg = s[4 * hw:4 * hw + 1]
    int_fg = s[4 * hw + 1:4 * hw + 2]
    o_ref[0, 0] = jnp.concatenate([init_bg, prev_bg, int_bg], axis=0)
    o_ref[0, 1] = jnp.concatenate([init_fg, prev_fg, int_fg], axis=0)


def pm_correlate(q, k_all):
    """q: (B, D, HW) f32, k_all: (B, 4*HW+2, D) f32 -> (B, 2, 3, HW)."""
    bx, d, hw = q.shape
    nk = k_all.shape[1]
    return pl.pallas_call(
        functools.partial(_pm_kernel, hw=hw),
        out_shape=jax.ShapeDtypeStruct((bx, 2, 3, hw), jnp.float32),
        grid_spec=pltpu.PrefetchScalarGridSpec(
            num_scalar_prefetch=0,
            grid=(bx,),
            in_specs=[
                pl.BlockSpec((1, d, hw), lambda i: (i, 0, 0)),
                pl.BlockSpec((1, nk, d), lambda i: (i, 0, 0)),
            ],
            out_specs=pl.BlockSpec((1, 2, 3, hw), lambda i: (i, 0, 0, 0)),
        ),
        compiler_params=pltpu.CompilerParams(dimension_semantics=("parallel",)),
    )(q, k_all)


def _att_kernel(x_ref, w_ref, b_ref, gsa_ref, gca_ref, osa_ref, oca_ref):
    """Fused SpatialAttention + ChannelAttention on one (C, HW) map."""
    x = x_ref[0]                                                  # (C, HW)
    c = x.shape[0]
    qkv = jnp.dot(w_ref[...], x, preferred_element_type=jnp.float32) + b_ref[...]
    q, k, v = qkv[0:c], qkv[c:2 * c], qkv[2 * c:3 * c]
    # spatial attention
    e = lax.dot_general(q, k, (((0,), (0,)), ((), ())),
                        preferred_element_type=jnp.float32)       # (HW, HW)
    e = e - jnp.max(e, axis=-1, keepdims=True)
    p = jnp.exp(e)
    a = p / jnp.sum(p, axis=-1, keepdims=True)
    sa = lax.dot_general(v, a, (((1,), (1,)), ((), ())),
                         preferred_element_type=jnp.float32)      # (C, HW)
    osa_ref[0] = gsa_ref[...] * sa + x
    # channel attention
    ec = lax.dot_general(x, x, (((1,), (1,)), ((), ())),
                         preferred_element_type=jnp.float32)      # (C, C)
    en = jnp.max(ec, axis=-1, keepdims=True) - ec
    en = en - jnp.max(en, axis=-1, keepdims=True)
    pc = jnp.exp(en)
    ac = pc / jnp.sum(pc, axis=-1, keepdims=True)
    ca = jnp.dot(ac, x, preferred_element_type=jnp.float32)       # (C, HW)
    oca_ref[0] = gca_ref[...] * ca + x


def fused_attention(x, wqkv, bqkv, gsa, gca):
    """x: (N, C, HW) f32 -> (sa, ca) each (N, C, HW) f32."""
    n, c, hw = x.shape
    return pl.pallas_call(
        _att_kernel,
        out_shape=(jax.ShapeDtypeStruct((n, c, hw), jnp.float32),
                   jax.ShapeDtypeStruct((n, c, hw), jnp.float32)),
        grid_spec=pltpu.PrefetchScalarGridSpec(
            num_scalar_prefetch=0,
            grid=(n,),
            in_specs=[
                pl.BlockSpec((1, c, hw), lambda i: (i, 0, 0)),
                pl.BlockSpec((3 * c, c), lambda i: (0, 0)),
                pl.BlockSpec((3 * c, 1), lambda i: (0, 0)),
                pl.BlockSpec((1, 1), lambda i: (0, 0)),
                pl.BlockSpec((1, 1), lambda i: (0, 0)),
            ],
            out_specs=[
                pl.BlockSpec((1, c, hw), lambda i: (i, 0, 0)),
                pl.BlockSpec((1, c, hw), lambda i: (i, 0, 0)),
            ],
        ),
        compiler_params=pltpu.CompilerParams(dimension_semantics=("parallel",)),
    )(x, wqkv, bqkv, gsa, gca)


# ====================== sub-pixel transposed-conv rewrite =====================

def _residue_offsets(k, s, pval):
    kk = -(-k // s)
    offs = []
    for r in range(s):
        b_r = ((r - pval) % s + s) % s
        offs.append((b_r + pval - r) // s)
    return kk, offs, max(offs)


def subpixel_weights(w_pt, b, k, s, pval, dtype=BF16):
    """PyTorch ConvTranspose2d weight (Cin, Cout, k, k) -> stride-1 sub-pixel
    conv taps (kkp*kkp, s*s*Cout, Cin) and tiled bias (s*s*Cout,)."""
    cin, cout = int(w_pt.shape[0]), int(w_pt.shape[1])
    kk, offs, max_c = _residue_offsets(k, s, pval)
    kkp = kk + max_c
    kidx = np.zeros((s, kkp), np.int32)
    kmsk = np.zeros((s, kkp), np.float32)
    for beta in range(s):
        r = (beta + pval) % s
        for ep in range(kkp):
            e = ep - offs[r]
            if 0 <= e < kk:
                kv = r + s * (kk - 1 - e)
                if kv < k:
                    kidx[beta, ep] = kv
                    kmsk[beta, ep] = 1.0
    wt = jnp.transpose(w_pt, (2, 3, 1, 0))                         # (k,k,Cout,Cin)
    g = wt[kidx[:, :, None, None], kidx[None, None, :, :]]         # (s,kkp,s,kkp,Cout,Cin)
    g = g * (kmsk[:, :, None, None, None, None] *
             kmsk[None, None, :, :, None, None])
    w_sub = jnp.transpose(g, (1, 3, 0, 2, 4, 5)).reshape(kkp * kkp, s * s * cout, cin)
    return w_sub.astype(dtype), jnp.tile(b, s * s)


def apply_deconv(x, spatial, w_taps, b_sub, *, k, s, pval, out_dtype=None):
    """Sub-pixel ConvTranspose2d(k, stride=s, pad=pval) on NCHW-flat input."""
    h, w = spatial
    kk, _, max_c = _residue_offsets(k, s, pval)
    kkp = kk + max_c
    cout = w_taps.shape[1] // (s * s)
    oh = (h - 1) * s - 2 * pval + k
    ow = (w - 1) * s - 2 * pval + k
    assert oh % s == 0 and ow % s == 0
    mh, mw = oh // s, ow // s
    pads = (kk - 1, mh - h + max_c, kk - 1, mw - w + max_c)
    y, (yh, yw) = conv_nchw_flat(x, spatial, w_taps, b_sub, kh=kkp, kw=kkp,
                                 pads=pads, out_dtype=out_dtype)
    assert (yh, yw) == (mh, mw)
    bx = x.shape[0]
    y = y.reshape(bx, s, s, cout, mh, mw)
    y = jnp.transpose(y, (0, 3, 4, 1, 5, 2)).reshape(bx, cout, oh * ow)
    return y, (oh, ow)


# ============================ module forward pieces ===========================

def pm_conv_feats(s16_flat, params):
    """1x1 conv + channel L2 normalisation -> (B, D_PM, HW) f32."""
    y, _ = conv_nchw_flat(s16_flat, (H16, H16), params['pm_w'], params['pm_b'],
                          kh=1, kw=1, pads=0, relu=False, normalize=True,
                          out_dtype=jnp.float32)
    return y


def get_init_state(s16_flat, given_seg, params):
    bx = s16_flat.shape[0]
    hw = H16 * H16
    cfn = pm_conv_feats(s16_flat, params)                 # (B, D, HW)
    pm_feats = jnp.transpose(cfn, (0, 2, 1))              # (B, HW, D)
    seg_bg = given_seg[:, 0].reshape(bx, hw, 1)
    seg_fg = given_seg[:, 1].reshape(bx, hw, 1)
    pm_bg = pm_feats * seg_bg
    pm_fg = pm_feats * seg_fg
    one_bg = jnp.maximum(pm_bg.sum(1, keepdims=True), 1e-7)
    one_fg = jnp.maximum(pm_fg.sum(1, keepdims=True), 1e-7)
    one_bg = one_bg / jnp.linalg.norm(one_bg, axis=-1, keepdims=True)
    one_fg = one_fg / jnp.linalg.norm(one_fg, axis=-1, keepdims=True)
    return {'pm_init': (pm_bg, pm_fg),
            'pm_prev': (pm_bg, pm_fg),
            'pm_int': (one_bg, one_fg),
            'prev_seg': given_seg}


def refine_forward(fb, sa_bg, ca_bg, sa_fg, ca_fg, prev_seg_flat, p):
    f16, _ = conv_nchw_flat(fb['s16'], (H16, H16), p['conv_s16_w'], p['conv_s16_b'],
                            kh=1, kw=1, pads=0, relu=True)
    u = jnp.concatenate([f16, sa_bg.astype(BF16), ca_bg.astype(BF16),
                         sa_fg.astype(BF16), ca_fg.astype(BF16),
                         prev_seg_flat.astype(BF16)], axis=1)
    u, _ = conv_nchw_flat(u, (H16, H16), p['blend_s16_w'], p['blend_s16_b'],
                          kh=3, kw=3, pads=1, relu=True)
    out16, sp16 = apply_deconv(u, (H16, H16), p['deconv1_1_w'], p['deconv1_1_b'],
                               k=4, s=2, pval=1)

    f8, _ = conv_nchw_flat(fb['s8'], sp16, p['conv_s8_w'], p['conv_s8_b'],
                           kh=1, kw=1, pads=0, relu=True)
    u = jnp.concatenate([f8, out16], axis=1)
    u, _ = conv_nchw_flat(u, sp16, p['blend_s8_w'], p['blend_s8_b'],
                          kh=3, kw=3, pads=1, relu=True)
    out8, sp8 = apply_deconv(u, sp16, p['deconv2_w'], p['deconv2_b'],
                             k=4, s=2, pval=1)

    f4, _ = conv_nchw_flat(fb['s4'], sp8, p['conv_s4_w'], p['conv_s4_b'],
                           kh=1, kw=1, pads=0, relu=True)
    u = jnp.concatenate([f4, out8], axis=1)
    u, _ = conv_nchw_flat(u, sp8, p['blend_s4_w'], p['blend_s4_b'],
                          kh=3, kw=3, pads=1, relu=True)
    # deconv3 (k=3, stride=1, pad=1) == plain conv with spatially flipped kernel.
    out4, _ = conv_nchw_flat(u, sp8, p['deconv3_w'], p['deconv3_b'],
                             kh=3, kw=3, pads=1, relu=False)

    d12, _ = apply_deconv(out16, sp16, p['deconv1_2_w'], p['deconv1_2_b'],
                          k=4, s=2, pval=1)
    cat6 = jnp.concatenate([d12, out8, out4], axis=1)
    seg, (oh, ow) = apply_deconv(cat6, sp8, p['predictor_w'], p['predictor_b'],
                                 k=6, s=4, pval=1, out_dtype=jnp.float32)
    return seg.reshape(seg.shape[0], 2, oh, ow)


def vos_forward(feats_flat, full_state, params, object_ids=(1,)):
    """VOS.forward: returns (updated full_state, dict of per-object segscores)."""
    hw = H16 * H16
    bx = feats_flat['s16'].shape[0]
    feats_bf = {k: v.astype(BF16) for k, v in feats_flat.items()}
    segscore = {}
    new_state = {}
    # TODO(synk): for many objects, fold the object loop into the batch axis.
    for oid in object_ids:
        st = dict(full_state[oid])
        cfn = pm_conv_feats(feats_flat['s16'], params)               # (B, D, HW)
        k_all = jnp.concatenate([st['pm_init'][0], st['pm_init'][1],
                                 st['pm_prev'][0], st['pm_prev'][1],
                                 st['pm_int'][0], st['pm_int'][1]], axis=1)
        cor = pm_correlate(cfn, k_all)                                # (B, 2, 3, HW)
        st['conv_feats_norm'] = cfn.reshape(bx, D_PM, H16, H16)
        sa, ca = fused_attention(cor.reshape(bx * 2, 3, hw),
                                 params['sa_wqkv'], params['sa_bqkv'],
                                 params['sa_gamma'], params['ca_gamma'])
        sa = sa.reshape(bx, 2, 3, hw)
        ca = ca.reshape(bx, 2, 3, hw)
        prev_seg_flat = st['prev_seg'].reshape(bx, 2, hw)
        segscore[oid] = refine_forward(feats_bf, sa[:, 0], ca[:, 0],
                                       sa[:, 1], ca[:, 1], prev_seg_flat, params)
        new_state[oid] = st
    return new_state, segscore


# ============================== parameter init ================================

def init_params(key):
    keys = iter(jax.random.split(key, 32))

    def u(shape, fan_in):
        bound = (6.0 / fan_in) ** 0.5
        return jax.random.uniform(next(keys), shape, jnp.float32, -bound, bound)

    z = lambda *s: jnp.zeros(s, jnp.float32)
    p = {}
    # PixelLevelMatching conv_in (C16 -> D_PM, 1x1)
    p['pm_w'] = u((D_PM, C16), C16)
    p['pm_b'] = z(D_PM)
    # SpatialAttentionModule(3) + ChannelAttentionModule (gamma = zeros, as in ref)
    p['sa_wq'], p['sa_bq'] = u((3, 3), 3), z(3, 1)
    p['sa_wk'], p['sa_bk'] = u((3, 3), 3), z(3, 1)
    p['sa_wv'], p['sa_bv'] = u((3, 3), 3), z(3, 1)
    p['sa_gamma'] = jnp.zeros((1, 1), jnp.float32)
    p['ca_gamma'] = jnp.zeros((1, 1), jnp.float32)
    # REFINE
    p['conv_s16_w'], p['conv_s16_b'] = u((CS, C16), C16), z(CS)
    p['blend_s16_w'], p['blend_s16_b'] = u((BL, CS + 14, 3, 3), (CS + 14) * 9), z(BL)
    p['conv_s8_w'], p['conv_s8_b'] = u((BL, C8), C8), z(BL)
    p['blend_s8_w'], p['blend_s8_b'] = u((BL, BL + 2, 3, 3), (BL + 2) * 9), z(BL)
    p['conv_s4_w'], p['conv_s4_b'] = u((BL, C4), C4), z(BL)
    p['blend_s4_w'], p['blend_s4_b'] = u((BL, BL + 2, 3, 3), (BL + 2) * 9), z(BL)
    p['deconv1_1_w'], p['deconv1_1_b'] = u((BL, 2, 4, 4), BL * 16), z(2)
    p['deconv1_2_w'], p['deconv1_2_b'] = u((2, 2, 4, 4), 2 * 16), z(2)
    p['deconv2_w'], p['deconv2_b'] = u((BL, 2, 4, 4), BL * 16), z(2)
    p['deconv3_w'], p['deconv3_b'] = u((BL, 2, 3, 3), BL * 9), z(2)
    p['predictor_w'], p['predictor_b'] = u((6, 2, 6, 6), 6 * 36), z(2)
    return p


def prepare_params(p):
    """Convert PyTorch-layout weights into kernel-ready tap layouts (bf16)."""

    def conv_taps(w):                                   # (Cout,Cin,kh,kw)->(kh*kw,Cout,Cin)
        cout, cin, kh, kw = w.shape
        return jnp.transpose(w, (2, 3, 0, 1)).reshape(kh * kw, cout, cin).astype(BF16)

    r = {}
    r['pm_w'] = p['pm_w'].reshape(1, D_PM, C16)          # keep f32 (normalized path)
    r['pm_b'] = p['pm_b']
    r['sa_wqkv'] = jnp.concatenate([p['sa_wq'], p['sa_wk'], p['sa_wv']], axis=0)
    r['sa_bqkv'] = jnp.concatenate([p['sa_bq'], p['sa_bk'], p['sa_bv']], axis=0)
    r['sa_gamma'] = p['sa_gamma']
    r['ca_gamma'] = p['ca_gamma']
    r['conv_s16_w'] = p['conv_s16_w'].reshape(1, CS, C16).astype(BF16)
    r['conv_s16_b'] = p['conv_s16_b']
    r['blend_s16_w'] = conv_taps(p['blend_s16_w'])
    r['blend_s16_b'] = p['blend_s16_b']
    r['conv_s8_w'] = p['conv_s8_w'].reshape(1, BL, C8).astype(BF16)
    r['conv_s8_b'] = p['conv_s8_b']
    r['blend_s8_w'] = conv_taps(p['blend_s8_w'])
    r['blend_s8_b'] = p['blend_s8_b']
    r['conv_s4_w'] = p['conv_s4_w'].reshape(1, BL, C4).astype(BF16)
    r['conv_s4_b'] = p['conv_s4_b']
    r['blend_s4_w'] = conv_taps(p['blend_s4_w'])
    r['blend_s4_b'] = p['blend_s4_b']
    r['deconv1_1_w'], r['deconv1_1_b'] = subpixel_weights(p['deconv1_1_w'], p['deconv1_1_b'], 4, 2, 1)
    r['deconv1_2_w'], r['deconv1_2_b'] = subpixel_weights(p['deconv1_2_w'], p['deconv1_2_b'], 4, 2, 1)
    r['deconv2_w'], r['deconv2_b'] = subpixel_weights(p['deconv2_w'], p['deconv2_b'], 4, 2, 1)
    # stride-1 transposed conv -> plain conv with spatially flipped kernel.
    r['deconv3_w'] = jnp.transpose(jnp.flip(p['deconv3_w'], (2, 3)),
                                   (2, 3, 1, 0)).reshape(9, 2, BL).astype(BF16)
    r['deconv3_b'] = p['deconv3_b']
    r['predictor_w'], r['predictor_b'] = subpixel_weights(p['predictor_w'], p['predictor_b'], 6, 4, 1)
    return r


# ==================================== main ====================================

if __name__ == "__main__":
    key = jax.random.PRNGKey(0)
    kf16, kf8, kf4, kseg, kp = jax.random.split(key, 5)

    s16 = jax.random.normal(kf16, (B, C16, H16, H16), jnp.float32)
    s8 = jax.random.normal(kf8, (B, C8, 2 * H16, 2 * H16), jnp.float32)
    s4 = jax.random.normal(kf4, (B, C4, 4 * H16, 4 * H16), jnp.float32)
    given_seg = jax.nn.softmax(
        jax.random.normal(kseg, (B, 2, H16, H16), jnp.float32), axis=1)

    feats_flat = {
        's16': s16.reshape(B, C16, H16 * H16),
        's8': s8.reshape(B, C8, (2 * H16) ** 2),
        's4': s4.reshape(B, C4, (4 * H16) ** 2),
    }

    params = prepare_params(init_params(kp))
    state = get_init_state(feats_flat['s16'], given_seg, params)
    full_state = {1: state}

    run = jax.jit(vos_forward)
    new_state, segscore = run(feats_flat, full_state, params)
    out = jax.block_until_ready(segscore[1])

    assert out.shape == (B, 2, 16 * H16, 16 * H16), out.shape
    assert new_state[1]['conv_feats_norm'].shape == (B, D_PM, H16, H16)
    assert bool(jnp.all(jnp.isfinite(out)))
    print("KERNEL_OK")
</pallas_src>

<mosaic_0001>
module attributes {stable_mosaic.version = 11 : i64} {
  func.func @_conv_kernel(%arg0: i32, %arg1: memref<1x32x64xf32, #tpu.memory_space<vmem>>, %arg2: memref<1x32x32xf32, #tpu.memory_space<vmem>>, %arg3: memref<32x1xf32, #tpu.memory_space<vmem>>, %arg4: memref<1x32x64xf32, #tpu.memory_space<vmem>>) attributes {dimension_semantics = [#tpu.dimension_semantics<parallel>], iteration_bounds = array<i64: 2>, scalar_prefetch = 0 : i64, scratch_operands = 0 : i64, tpu.core_type = #tpu.core_type<tc>, window_params = [{transform_indices = @transform_0, window_bounds = array<i64: 1, 32, 64>}, {pipeline_mode = #tpu.pipeline_mode<synchronous>, transform_indices = @transform_1, window_bounds = array<i64: 1, 32, 32>}, {pipeline_mode = #tpu.pipeline_mode<synchronous>, transform_indices = @transform_2, window_bounds = array<i64: 32, 1>}, {transform_indices = @transform_3, window_bounds = array<i64: 1, 32, 64>}]} {
    %c0 = arith.constant 0 : index
    %c0_0 = arith.constant 0 : index
    %c0_1 = arith.constant 0 : index
    %0 = vector.load %arg1[%c0, %c0_0, %c0_1] : memref<1x32x64xf32, #tpu.memory_space<vmem>>, vector<1x32x64xf32>
    %1 = vector.shape_cast %0 : vector<1x32x64xf32> to vector<32x64xf32>
    %cst = arith.constant 0.000000e+00 : f32
    %2 = vector.broadcast %cst : f32 to vector<32x64xf32>
    %c0_2 = arith.constant 0 : index
    %c0_3 = arith.constant 0 : index
    %c0_4 = arith.constant 0 : index
    %3 = vector.load %arg2[%c0_2, %c0_3, %c0_4] : memref<1x32x32xf32, #tpu.memory_space<vmem>>, vector<1x32x32xf32>
    %4 = vector.shape_cast %3 : vector<1x32x32xf32> to vector<32x32xf32>
    %cst_5 = arith.constant dense<0.000000e+00> : vector<32x64xf32>
    %5 = tpu.matmul %4, %1, %cst_5 {dimension_numbers = #tpu.dot_dimension_numbers<[1], [0], [0], [1], [0, 0, 1, 1], [], []>} : vector<32x32xf32>, vector<32x64xf32>, vector<32x64xf32> -> vector<32x64xf32>
    %6 = arith.addf %2, %5 : vector<32x64xf32>
    %c0_6 = arith.constant 0 : index
    %c0_7 = arith.constant 0 : index
    %7 = vector.load %arg3[%c0_6, %c0_7] : memref<32x1xf32, #tpu.memory_space<vmem>>, vector<32x1xf32>
    %8 = vector.broadcast %7 : vector<32x1xf32> to vector<32x64xf32>
    %9 = arith.addf %6, %8 : vector<32x64xf32>
    %10 = arith.mulf %9, %9 : vector<32x64xf32>
    %cst_8 = arith.constant dense<0.000000e+00> : vector<64xf32>
    %11 = vector.multi_reduction <add>, %10, %cst_8 [0] : vector<32x64xf32> to vector<64xf32>
    %12 = vector.shape_cast %11 : vector<64xf32> to vector<1x64xf32>
    %cst_9 = arith.constant 9.99999996E-13 : f32
    %13 = vector.broadcast %cst_9 : f32 to vector<1x64xf32>
    %14 = arith.maximumf %12, %13 : vector<1x64xf32>
    %15 = math.rsqrt %14 : vector<1x64xf32>
    %16 = vector.broadcast %15 : vector<1x64xf32> to vector<32x64xf32>
    %17 = arith.mulf %9, %16 : vector<32x64xf32>
    %c0_10 = arith.constant 0 : index
    %c0_11 = arith.constant 0 : index
    %c0_12 = arith.constant 0 : index
    %18 = vector.load %arg4[%c0_10, %c0_11, %c0_12] : memref<1x32x64xf32, #tpu.memory_space<vmem>>, vector<1x32x64xf32>
    %19 = vector.shape_cast %18 : vector<1x32x64xf32> to vector<32x64xf32>
    %20 = vector.shape_cast %17 : vector<32x64xf32> to vector<1x32x64xf32>
    tpu.vector_store %arg4[%c0_10, %c0_11, %c0_12], %20 {strides = array<i32>} : memref<1x32x64xf32, #tpu.memory_space<vmem>>, vector<1x32x64xf32>,
    return
  }
  func.func @transform_0(%arg0: i32) -> (i32, i32, i32) {
    %c0_i32 = arith.constant 0 : i32
    %c0_i32_0 = arith.constant 0 : i32
    %c0_i32_1 = arith.constant 0 : i32
    return %arg0, %c0_i32, %c0_i32_0 : i32, i32, i32
  }
  func.func @transform_1(%arg0: i32) -> (i32, i32, i32) {
    %c0_i32 = arith.constant 0 : i32
    %c0_i32_0 = arith.constant 0 : i32
    %c0_i32_1 = arith.constant 0 : i32
    %c0_i32_2 = arith.constant 0 : i32
    return %c0_i32, %c0_i32_0, %c0_i32_1 : i32, i32, i32
  }
  func.func @transform_2(%arg0: i32) -> (i32, i32) {
    %c0_i32 = arith.constant 0 : i32
    %c0_i32_0 = arith.constant 0 : i32
    %c0_i32_1 = arith.constant 0 : i32
    return %c0_i32, %c0_i32_0 : i32, i32
  }
  func.func @transform_3(%arg0: i32) -> (i32, i32, i32) {
    %c0_i32 = arith.constant 0 : i32
    %c0_i32_0 = arith.constant 0 : i32
    %c0_i32_1 = arith.constant 0 : i32
    return %arg0, %c0_i32, %c0_i32_0 : i32, i32, i32
  }
}

</mosaic_0001>

<llo_original>
// kernel: tpu_custom_call.1
$region0: #{tpu_custom_call.1}
  #allocation0 [shape = 'u32[]', space=smem, size = 0x4, offset = 0x4, fixed_abs, tag = 'smem constant byte address 0x4 - core index']
  #allocation1 [shape = 'u32[144,128]{1,0:T(1,128)}', space=vmem, size = 0x12000, scoped, tag = 'internal scratch']
  %s0 = inlined_call_operand.hbm [shape: f32[2,32,64], index: 0, kind: input, shape index: {}]
  %s1 = inlined_call_operand.vmem [shape: f32[1,32,32], index: 1, kind: input, shape index: {}]
  %s2 = inlined_call_operand.vmem [shape: f32[32,1], index: 2, kind: input, shape index: {}]
  %s3 = inlined_call_operand.hbm [shape: f32[2,32,64], index: 3, kind: output, shape index: {}]
  %s4 = sld [smem:[#allocation0]]
  $region49: #{tpu_custom_call.1} parent=0
    _
  %s6 = ssub.s32 1, %s4
  %s7 = scalar_select 0, %s6, %s4
  $region1: #{tpu_custom_call.1} parent=0
    #allocation2 [shape = 'u8[32768]{0}', space=vmem, size = 0x8000, scoped, tag = 'input window, operand 0']
    #allocation3 [shape = 's32[2]{0}', space=sflag, size = 0x8, scoped, tag = 'scoped memory for tpu_custom_call.1']
    #allocation4 [shape = 's32[2]{0}', space=sflag, size = 0x8, scoped, tag = 'scoped memory for tpu_custom_call.1']
    #allocation5 [shape = 'u8[32768]{0}', space=vmem, size = 0x8000, scoped, tag = 'output window, operand 0']
    %8 = vsyncpa [#allocation3], 0
    %s9 = scalar_lea.sflag [#allocation3], 1
    %10 = vsyncpa %s9, 0
    %11 = vsyncpa [#allocation4], 0
    %s12 = scalar_lea.sflag [#allocation4], 1
    %13 = vsyncpa %s12, 0
    loop: start=0, step=1, limit=4
    $region2: #{tpu_custom_call.1} parent=1 // loop_pre_header
      _
    $region3: #{tpu_custom_call.1} parent=1 // loop_header
      %s15 = sphi 0, %s19
      %p16 = scmp.ge.s32.totalorder %s15, 4
      %s25 = sphi 0, %s27
      %s28 = sphi 0, %s25
      %s29 = sphi 0, %s28
      %s45 = sphi 0, %s29
      %s49 = sphi 0, %s49
      %s51 = sphi 0, %s49
      %s52 = sphi 0, %s51
      %s66 = sphi 0, %s52
      %s70 = sphi 0, %s70
      %s72 = sphi 0, %s70
      %s73 = sphi 0, %s72
      %s87 = sphi 0, %s73
      %s93 = sphi 0, %s95
      %s96 = sphi 0, %s93
      %s97 = sphi 0, %s96
      %s113 = sphi 0, %s97
    $region4: #{tpu_custom_call.1} parent=1 // loop_header_branch
      %18 = sbr.rel (%p16) target = $region8
    $region5: #{tpu_custom_call.1} parent=1 // loop_body
      %s20 = ssub.s32 %s15, 1
      %s21 = ssub.s32 %s15, 2
      %s22 = sadd.s32 %s15, 1
      %s23 = ssub.s32 %s15, %s22
      %p24 = scmp.eq.s32.totalorder %s23, 0
      %s26 = sadd.s32 %s25, 1
      %s27 = scalar_select %p24, %s25, %s26
      %p30 = pneg %p24
      %p31 = scmp.eq.s32.totalorder %s15, 1
      %p32 = por %p30, %p31
      %p33 = scmp.ne.s32.totalorder %s25, %s28
      %p34 = scmp.eq.s32.totalorder %s15, 0
      %p35 = por %p33, %p34
      %p36 = scmp.ne.s32.totalorder %s25, %s28
      %p37 = scmp.eq.s32.totalorder %s20, 1
      %p38 = por %p36, %p37
      %p39 = scmp.ne.s32.totalorder %s28, %s29
      %p40 = scmp.eq.s32.totalorder %s20, 0
      %p41 = por %p39, %p40
      %p42 = scmp.ne.s32.totalorder %s28, %s29
      %p43 = scmp.eq.s32.totalorder %s21, 1
      %p44 = por %p42, %p43
      %p46 = scmp.ne.s32.totalorder %s29, %s45
      %p47 = scmp.eq.s32.totalorder %s21, 0
      %p48 = por %p46, %p47
      %s50 = sadd.s32 %s49, 1
      %p53 = scmp.eq.s32.totalorder %s15, 1
      %p54 = scmp.ne.s32.totalorder %s49, %s51
      %p55 = scmp.eq.s32.totalorder %s15, 0
      %p56 = por %p54, %p55
      %p57 = scmp.ne.s32.totalorder %s49, %s51
      %p58 = scmp.eq.s32.totalorder %s20, 1
      %p59 = por %p57, %p58
      %p60 = scmp.ne.s32.totalorder %s51, %s52
      %p61 = scmp.eq.s32.totalorder %s20, 0
      %p62 = por %p60, %p61
      %p63 = scmp.ne.s32.totalorder %s51, %s52
      %p64 = scmp.eq.s32.totalorder %s21, 1
      %p65 = por %p63, %p64
      %p67 = scmp.ne.s32.totalorder %s52, %s66
      %p68 = scmp.eq.s32.totalorder %s21, 0
      %p69 = por %p67, %p68
      %s71 = sadd.s32 %s70, 1
      %p74 = scmp.eq.s32.totalorder %s15, 1
      %p75 = scmp.ne.s32.totalorder %s70, %s72
      %p76 = scmp.eq.s32.totalorder %s15, 0
      %p77 = por %p75, %p76
      %p78 = scmp.ne.s32.totalorder %s70, %s72
      %p79 = scmp.eq.s32.totalorder %s20, 1
      %p80 = por %p78, %p79
      %p81 = scmp.ne.s32.totalorder %s72, %s73
      %p82 = scmp.eq.s32.totalorder %s20, 0
      %p83 = por %p81, %p82
      %p84 = scmp.ne.s32.totalorder %s72, %s73
      %p85 = scmp.eq.s32.totalorder %s21, 1
      %p86 = por %p84, %p85
      %p88 = scmp.ne.s32.totalorder %s73, %s87
      %p89 = scmp.eq.s32.totalorder %s21, 0
      %p90 = por %p88, %p89
      %s91 = ssub.s32 %s15, %s22
      %p92 = scmp.eq.s32.totalorder %s91, 0
      %s94 = sadd.s32 %s93, 1
      %s95 = scalar_select %p92, %s93, %s94
      %p98 = pneg %p92
      %p99 = scmp.eq.s32.totalorder %s15, 1
      %p100 = por %p98, %p99
      %p101 = scmp.ne.s32.totalorder %s93, %s96
      %p102 = scmp.eq.s32.totalorder %s15, 0
      %p103 = por %p101, %p102
      %p104 = scmp.ne.s32.totalorder %s93, %s96
      %p105 = scmp.eq.s32.totalorder %s20, 1
      %p106 = por %p104, %p105
      %p107 = scmp.ne.s32.totalorder %s96, %s97
      %p108 = scmp.eq.s32.totalorder %s20, 0
      %p109 = por %p107, %p108
      %p110 = scmp.ne.s32.totalorder %s96, %s97
      %p111 = scmp.eq.s32.totalorder %s21, 1
      %p112 = por %p110, %p111
      %p114 = scmp.ne.s32.totalorder %s97, %s113
      %p115 = scmp.eq.s32.totalorder %s21, 0
      %p116 = por %p114, %p115
      %p117 = scmp.le.s32.totalorder 1, %s15
      %p118 = scmp.lt.s32.totalorder %s15, 3
      %p119 = pnand %p117, %p118
      %p120 = pneg %p119
      // Predicated region
      $region9: #{tpu_custom_call.1} parent=5 // pred_check
        _
      $region10: #{tpu_custom_call.1} parent=5 // pred_check_branch
        %122 = sbr.rel (%p119) target = $region12
      $region11: #{tpu_custom_call.1} parent=5 // pred_region
        %s123 = ssub.s32 %s15, 1
        // Predicated region
        $region13: #{tpu_custom_call.1} parent=11 // pred_check
          %p124 = pneg %p62
        $region14: #{tpu_custom_call.1} parent=11 // pred_check_branch
          %126 = sbr.rel (%p124) target = $region16
        $region15: #{tpu_custom_call.1} parent=11 // pred_region
          _
        $region16: #{tpu_custom_call.1} parent=11 // pred_fallthru
          _
        // Predicated region
        $region17: #{tpu_custom_call.1} parent=11 // pred_check
          %p127 = pneg %p83
        $region18: #{tpu_custom_call.1} parent=11 // pred_check_branch
          %129 = sbr.rel (%p127) target = $region20
        $region19: #{tpu_custom_call.1} parent=11 // pred_region
          _
        $region20: #{tpu_custom_call.1} parent=11 // pred_fallthru
          _
      $region12: #{tpu_custom_call.1} parent=5 // pred_fallthru
        _
      %p130 = scmp.lt.s32.totalorder %s15, 2
      // Predicated region
      $region21: #{tpu_custom_call.1} parent=5 // pred_check
        %p131 = pneg %p130
      $region22: #{tpu_custom_call.1} parent=5 // pred_check_branch
        %133 = sbr.rel (%p131) target = $region24
      $region23: #{tpu_custom_call.1} parent=5 // pred_region
        // Predicated region
        $region25: #{tpu_custom_call.1} parent=23 // pred_check
          %p134 = pneg %p35
        $region26: #{tpu_custom_call.1} parent=23 // pred_check_branch
          %136 = sbr.rel (%p134) target = $region28
        $region27: #{tpu_custom_call.1} parent=23 // pred_region
          %s137 = sand.u32 %s25, 1
          %s138 = scalar_lea.sflag [#allocation3], %s137
          %s139 = sand.u32 %s25, 1
          %s140 = smul.addr %s139, 32
          %s141 = scalar_lea.vmem [#allocation2], %s140
          %s143 = ssub.s32 512, 512
          %144 = vsyncadd %s138, %s143
          %s145 = smul.addr %s15, 4
          %s146 = smul.addr %s145, 128
          %s147 = scalar_lea.hbm %s0, %s146
          %s148 = sshll.u32 %s141, 4
          %s149 = int_to_ptr.vmem [resolvable:$true] %s148
          %154 = dma.hbm_to_vmem [thread:$0]  %s147, 512, %s149, %s138, 128, 128, 8
        $region28: #{tpu_custom_call.1} parent=23 // pred_fallthru
          _
      $region24: #{tpu_custom_call.1} parent=5 // pred_fallthru
        _
      %p155 = scmp.le.s32.totalorder 1, %s15
      %p156 = scmp.lt.s32.totalorder %s15, 3
      %p157 = pnand %p155, %p156
      %p158 = pneg %p157
      // Predicated region
      $region29: #{tpu_custom_call.1} parent=5 // pred_check
        _
      $region30: #{tpu_custom_call.1} parent=5 // pred_check_branch
        %160 = sbr.rel (%p157) target = $region32
      $region31: #{tpu_custom_call.1} parent=5 // pred_region
        %s161 = ssub.s32 %s15, 1
        %s162 = sand.u32 %s28, 1
        %s163 = scalar_lea.sflag [#allocation3], %s162
        %s164 = sand.u32 %s28, 1
        %s165 = smul.addr %s164, 32
        %s166 = scalar_lea.vmem [#allocation2], %s165
        // Predicated region
        $region33: #{tpu_custom_call.1} parent=31 // pred_check
          %p167 = pneg %p41
        $region34: #{tpu_custom_call.1} parent=31 // pred_check_branch
          %169 = sbr.rel (%p167) target = $region36
        $region35: #{tpu_custom_call.1} parent=31 // pred_region
          %170 = dma.done %s163, 512
        $region36: #{tpu_custom_call.1} parent=31 // pred_fallthru
          _
        %s171 = sand.u32 %s28, 1
        %s172 = scalar_lea.sflag [#allocation3], %s171
        %s173 = sand.u32 %s28, 1
        %s174 = smul.addr %s173, 32
        %s175 = scalar_lea.vmem [#allocation2], %s174
        %p176 = pneg %p41
        %p177 = pneg %p38
        %p178 = pneg %p62
        %p179 = pneg %p59
        %p180 = pneg %p83
        %p181 = pneg %p80
        %p182 = pneg %p109
        %p183 = pneg %p106
        %s184 = sand.u32 %s96, 1
        %s185 = scalar_lea.sflag [#allocation4], %s184
        %s186 = sand.u32 %s96, 1
        %s187 = smul.addr %s186, 32
        %s188 = scalar_lea.vmem [#allocation5], %s187
        %v189 = vld [vmem:[%s166] sm:$0xff]
        %v190 = vld [vmem:[%s166 + $0x8] sm:$0xff]
        %v191 = vld [vmem:[%s166 + $0x10] sm:$0xff]
        %v192 = vld [vmem:[%s166 + $0x18] sm:$0xff]
        %v193 = vld [vmem:[%s1] sm:$0xff]
        %v194 = vld [vmem:[%s1 + $0x8] sm:$0xff]
        %v195 = vld [vmem:[%s1 + $0x10] sm:$0xff]
        %v196 = vld [vmem:[%s1 + $0x18] sm:$0xff]
        %v197 = vld [vmem:[%s2] sm:$0xff]
        %v198 = vld [vmem:[%s2 + $0x8] sm:$0xff]
        %v199 = vld [vmem:[%s2 + $0x10] sm:$0xff]
        %v200 = vld [vmem:[%s2 + $0x18] sm:$0xff]
        %202 = vset.pattern.permute.xlu0 0
        %203 = vperm.xlu0 %202, %v197
        %v204 = vpop.permute.xlu0 %203
        %207 = vset.pattern.permute.xlu0 0
        %208 = vperm.xlu0 %207, %v198
        %v209 = vpop.permute.xlu0 %208
        %212 = vset.pattern.permute.xlu0 0
        %213 = vperm.xlu0 %212, %v199
        %v214 = vpop.permute.xlu0 %213
        %217 = vset.pattern.permute.xlu0 0
        %218 = vperm.xlu0 %217, %v200
        %v219 = vpop.permute.xlu0 %218
        %vm221 = vcmask 261120
        %v223 = vsel %vm221, %v193, 0
        %v226 = vsel %vm221, %v194, 0
        %v229 = vsel %vm221, %v195, 0
        %v232 = vsel %vm221, %v196, 0
        %234 = vmatprep.subr.mxu0 0.0
        %235 = vmatpush1.msra.mxu0 %v189
        %236 = vmatprep.subr.mxu0 0.0
        %237 = vmatpush1.msra.mxu0 %v190
        %238 = vmatprep.subr.mxu0 0.0
        %239 = vmatpush1.msra.mxu0 %v191
        %240 = vmatprep.subr.mxu0 0.0
        %241 = vmatpush1.msra.mxu0 %v192
        %242 = vmatprep.subr.mxu0 0.0
        %243 = vmatpush1.msra.mxu0 0.0
        %244 = vmatprep.subr.mxu0 0.0
        %245 = vmatpush1.msra.mxu0 0.0
        %246 = vmatprep.subr.mxu0 0.0
        %247 = vmatpush1.msra.mxu0 0.0
        %248 = vmatprep.subr.mxu0 0.0
        %249 = vmatpush1.msra.mxu0 0.0
        %250 = vmatprep.subr.mxu0 0.0
        %251 = vmatpush1.msra.mxu0 0.0
        %252 = vmatprep.subr.mxu0 0.0
        %253 = vmatpush1.msra.mxu0 0.0
        %254 = vmatprep.subr.mxu0 0.0
        %255 = vmatpush1.msra.mxu0 0.0
        %256 = vmatprep.subr.mxu0 0.0
        %257 = vmatpush1.msra.mxu0 0.0
        %258 = vmatprep.subr.mxu0 0.0
        %259 = vmatpush1.msra.mxu0 0.0
        %260 = vmatprep.subr.mxu0 0.0
        %261 = vmatpush1.msra.mxu0 0.0
        %262 = vmatprep.subr.mxu0 0.0
        %263 = vmatpush1.msra.mxu0 0.0
        %264 = vmatprep.subr.mxu0 0.0
        %265 = vmatpush1.msra.mxu0 0.0
        %266 = vmatprep.subr.mxu0 0.0
        %267 = vmatpush1.msra.mxu0 0.0
        %268 = vmatprep.subr.mxu0 0.0
        %269 = vmatpush1.msra.mxu0 0.0
        %270 = vmatprep.subr.mxu0 0.0
        %271 = vmatpush1.msra.mxu0 0.0
        %272 = vmatprep.subr.mxu0 0.0
        %273 = vmatpush1.msra.mxu0 0.0
        %274 = vmatprep.subr.mxu0 0.0
        %275 = vmatpush1.msra.mxu0 0.0
        %276 = vmatprep.subr.mxu0 0.0
        %277 = vmatpush1.msra.mxu0 0.0
        %278 = vmatprep.subr.mxu0 0.0
        %279 = vmatpush1.msra.mxu0 0.0
        %280 = vmatprep.subr.mxu0 0.0
        %281 = vmatpush1.msra.mxu0 0.0
        %282 = vmatprep.subr.mxu0 0.0
        %283 = vmatpush1.msra.mxu0 0.0
        %284 = vmatprep.subr.mxu0 0.0
        %285 = vmatpush1.msra.mxu0 0.0
        %286 = vmatprep.subr.mxu0 0.0
        %287 = vmatpush1.msra.mxu0 0.0
        %288 = vmatprep.subr.mxu0 0.0
        %289 = vmatpush1.msra.mxu0 0.0
        %290 = vmatprep.subr.mxu0 0.0
        %291 = vmatpush1.msra.mxu0 0.0
        %292 = vmatprep.subr.mxu0 0.0
        %293 = vmatpush1.msra.mxu0 0.0
        %294 = vmatprep.subr.mxu0 0.0
        %295 = vmatpush1.msra.mxu0 0.0
        %296 = vmatprep.subr.mxu0 0.0
        %297 = vmatpush1.msra.mxu0 0.0
        %298 = vmatprep.mubr.f32.mxu0 0.0
        %299 = vmatmul.mubr.f32.gmra.mrb[0].mxu0 %v223
        %v300 = vpop.f32.mrb[0].mxu0
        %v301 = vadd.f32 %v204, %v300
        %v302 = vpop.f32.mrb[0].mxu0
        %303 = vmatprep.mubr.f32.mxu0 0.0
        %304 = vmatmul.mubr.f32.gmra.mrb[0].mxu0 %v226
        %v305 = vpop.f32.mrb[0].mxu0
        %v306 = vadd.f32 %v209, %v305
        %v307 = vpop.f32.mrb[0].mxu0
        %308 = vmatprep.mubr.f32.mxu0 0.0
        %309 = vmatmul.mubr.f32.gmra.mrb[0].mxu0 %v229
        %v310 = vpop.f32.mrb[0].mxu0
        %v311 = vadd.f32 %v214, %v310
        %v312 = vpop.f32.mrb[0].mxu0
        %313 = vmatprep.mubr.f32.mxu0 0.0
        %314 = vmatmul.mubr.f32.gmra.mrb[0].mxu0 %v232
        %v315 = vpop.f32.mrb[0].mxu0
        %v316 = vadd.f32 %v219, %v315
        %v317 = vpop.f32.mrb[0].mxu0
        %318 = vdwg.mxu0
        %v319 = vmul.f32 %v301, %v301
        %v320 = vmul.f32 %v306, %v306
        %v321 = vmul.f32 %v311, %v311
        %v322 = vmul.f32 %v316, %v316
        %vm323 = vcmask 523264
        %v324 = vsel %vm323, %v319, 0.0
        %v325 = vsel %vm323, %v320, 0.0
        %v326 = vadd.f32 %v324, %v325
        %v327 = vsel %vm323, %v321, 0.0
        %v328 = vadd.f32 %v326, %v327
        %v329 = vsel %vm323, %v322, 0.0
        %v330 = vadd.f32 %v328, %v329
        %v331 = vrot.slane %v330, 4
        %v332 = vadd.f32 %v330, %v331
        %v333 = vrot.slane %v332, 2
        %v334 = vadd.f32 %v332, %v333
        %v335 = vrot.slane %v334, 1
        %v336 = vadd.f32 %v334, %v335
        %v337 = vmax.f32 %v336, 1e-12
        %v338 = vrsqrt.pop %v337
        %v339 = vmul.f32 %v301, %v338
        %v340 = vmul.f32 %v306, %v338
        %v341 = vmul.f32 %v311, %v338
        %v342 = vmul.f32 %v316, %v338
        %343 = vst.msk [vmem:[%s188] sm:$0xff] %vm323, %v339
        %344 = vst.msk [vmem:[%s188 + $0x8] sm:$0xff] %vm323, %v340
        %345 = vst.msk [vmem:[%s188 + $0x10] sm:$0xff] %vm323, %v341
        %346 = vst.msk [vmem:[%s188 + $0x18] sm:$0xff] %vm323, %v342
        %s347 = sand.u32 %s96, 1
        %s348 = scalar_lea.sflag [#allocation4], %s347
        %s349 = sand.u32 %s96, 1
        %s350 = smul.addr %s349, 32
        %s351 = scalar_lea.vmem [#allocation5], %s350
        // Predicated region
        $region37: #{tpu_custom_call.1} parent=31 // pred_check
          %p352 = pneg %p106
        $region38: #{tpu_custom_call.1} parent=31 // pred_check_branch
          %354 = sbr.rel (%p352) target = $region40
        $region39: #{tpu_custom_call.1} parent=31 // pred_region
          %s356 = ssub.s32 512, 512
          %357 = vsyncadd %s348, %s356
          %s358 = smul.addr %s20, 4
          %s359 = smul.addr %s358, 128
          %s360 = scalar_lea.hbm %s3, %s359
          %s361 = sshll.u32 %s351, 4
          %s362 = int_to_ptr.vmem [resolvable:$true] %s361
          %367 = dma.vmem_to_hbm [thread:$0]  %s362, 512, %s360, %s348, 128, 128, 8
        $region40: #{tpu_custom_call.1} parent=31 // pred_fallthru
          _
      $region32: #{tpu_custom_call.1} parent=5 // pred_fallthru
        _
      %p368 = scmp.le.s32.totalorder 2, %s15
      // Predicated region
      $region41: #{tpu_custom_call.1} parent=5 // pred_check
        %p369 = pneg %p368
      $region42: #{tpu_custom_call.1} parent=5 // pred_check_branch
        %371 = sbr.rel (%p369) target = $region44
      $region43: #{tpu_custom_call.1} parent=5 // pred_region
        %s372 = ssub.s32 %s15, 2
        // Predicated region
        $region45: #{tpu_custom_call.1} parent=43 // pred_check
          %p373 = pneg %p112
        $region46: #{tpu_custom_call.1} parent=43 // pred_check_branch
          %375 = sbr.rel (%p373) target = $region48
        $region47: #{tpu_custom_call.1} parent=43 // pred_region
          %s376 = sand.u32 %s97, 1
          %s377 = scalar_lea.sflag [#allocation4], %s376
          %s378 = sand.u32 %s97, 1
          %s379 = smul.addr %s378, 32
          %s380 = scalar_lea.vmem [#allocation5], %s379
          %381 = dma.done %s377, 512
        $region48: #{tpu_custom_call.1} parent=43 // pred_fallthru
          _
      $region44: #{tpu_custom_call.1} parent=5 // pred_fallthru
        _
    $region6: #{tpu_custom_call.1} parent=1 // loop_footer
      %s19 = sadd.s32 1, %s15
    $region7: #{tpu_custom_call.1} parent=1 // loop_footer_branch
      %14 = sbr.rel target = $region3
    $region8: #{tpu_custom_call.1} parent=1 // loop_exit
      _
    %382 = vsyncpa [#allocation3], 1
    %s383 = scalar_lea.sflag [#allocation3], 1
    %384 = vsyncpa %s383, 1
    %385 = vsyncpa [#allocation4], 1
    %s386 = scalar_lea.sflag [#allocation4], 1
    %387 = vsyncpa %s386, 1

</llo_original>
